<compile_context>
chip_gen: v6e
topology: v6e:2x2x1
jax: 0.10.0
libtpu: 0.0.40
codegen_flags: <defaults>
</compile_context>

<pallas_src>
from functools import partial

import jax
import jax.numpy as jnp
from jax.experimental import pallas as pl
from jax.experimental.pallas import tpu as pltpu


def sine_activation_kernel(tau_ref, w_ref, b_ref, w0_ref, b0_ref, out_ref, *,
                           num_sin):
    """Fused Time2Vec block (one row-tile).

    tau_ref : [R, 1]      time scalars (lane-broadcast against features)
    w_ref   : [R, K-1]    periodic weights
    b_ref   : [R, K-1]    periodic biases
    w0_ref  : [R, 1]      linear weight
    b0_ref  : [R, 1]      linear bias
    out_ref : [R, K]      cols 0..K-2 -> sin(tau*w + b);  col K-1 -> tau*w0 + b0
    """
    tau = tau_ref[...]                                              # [R, 1]
    # Periodic part: fma on the VPU, sin on the EUP slot.
    out_ref[:, :num_sin] = jnp.sin(tau * w_ref[...] + b_ref[...])   # [R, K-1]
    # Linear part: plain fma, no transcendental issued.
    out_ref[:, num_sin:] = tau * w0_ref[...] + b0_ref[...]          # [R, 1]


def sine_activation(tau, w, b, w0, b0, *, block_rows=4096):
    """tau: [B, T]; w/b: [B, T, K-1]; w0/b0: [B, T, 1] -> [B, T, K] (float32)."""
    B, T, km1 = w.shape
    K = km1 + 1
    N = B * T

    # Free (contiguous) reshapes only — no extra HBM pass in front of the kernel.
    tau2 = tau.reshape(N, 1).astype(jnp.float32)
    w2 = w.reshape(N, km1).astype(jnp.float32)
    b2 = b.reshape(N, km1).astype(jnp.float32)
    w02 = w0.reshape(N, 1).astype(jnp.float32)
    b02 = b0.reshape(N, 1).astype(jnp.float32)

    # Row tile: big enough to amortize per-step overhead, capped so the grid
    # has >=2 steps when possible (keeps both v7x TensorCores streaming).
    if N >= 16:
        half = ((pl.cdiv(N, 2) + 7) // 8) * 8        # multiple of 8 sublanes
        rows = max(8, min(block_rows, half))
    else:
        rows = N                                     # full-extent block is legal
    grid = (pl.cdiv(N, rows),)

    out = pl.pallas_call(
        partial(sine_activation_kernel, num_sin=km1),
        out_shape=jax.ShapeDtypeStruct((N, K), jnp.float32),
        grid_spec=pltpu.PrefetchScalarGridSpec(
            num_scalar_prefetch=0,
            grid=grid,
            in_specs=[
                pl.BlockSpec((rows, 1), lambda i: (i, 0)),      # tau
                pl.BlockSpec((rows, km1), lambda i: (i, 0)),    # w
                pl.BlockSpec((rows, km1), lambda i: (i, 0)),    # b
                pl.BlockSpec((rows, 1), lambda i: (i, 0)),      # w0
                pl.BlockSpec((rows, 1), lambda i: (i, 0)),      # b0
            ],
            out_specs=pl.BlockSpec((rows, K), lambda i: (i, 0)),
        ),
        compiler_params=pltpu.CompilerParams(
            dimension_semantics=("parallel",)),      # shard row tiles across TCs
    )(tau2, w2, b2, w02, b02)
    return out.reshape(B, T, K)


if __name__ == "__main__":
    # Small shapes consistent with SineActivation(batch_size, seq_len, out_features).
    batch_size, seq_len, out_features = 4, 16, 64

    key = jax.random.PRNGKey(0)
    k_tau, k_w0, k_b0, k_w, k_b = jax.random.split(key, 5)
    tau = jax.random.normal(k_tau, (batch_size, seq_len), jnp.float32)
    w0 = jax.random.normal(k_w0, (batch_size, seq_len, 1), jnp.float32)
    b0 = jax.random.normal(k_b0, (batch_size, seq_len, 1), jnp.float32)
    w = jax.random.normal(k_w, (batch_size, seq_len, out_features - 1), jnp.float32)
    b = jax.random.normal(k_b, (batch_size, seq_len, out_features - 1), jnp.float32)

    out = sine_activation(tau, w, b, w0, b0)
    out = jax.block_until_ready(out)

    # Pure-JAX reference mirroring t2v / SineActivation.forward.
    v1 = jnp.sin(tau[..., None] * w + b)
    v2 = tau[..., None] * w0 + b0
    ref = jnp.concatenate([v1, v2], axis=-1)

    assert out.shape == (batch_size, seq_len, out_features)
    assert bool(jnp.all(jnp.isfinite(out)))
    assert bool(jnp.allclose(out, ref, atol=1e-5, rtol=1e-5))
    print("KERNEL_OK")
</pallas_src>

<mosaic_0001>
module attributes {stable_mosaic.version = 11 : i64} {
  func.func @sine_activation_kernel(%arg0: i32, %arg1: memref<32x1xf32, #tpu.memory_space<vmem>>, %arg2: memref<32x63xf32, #tpu.memory_space<vmem>>, %arg3: memref<32x63xf32, #tpu.memory_space<vmem>>, %arg4: memref<32x1xf32, #tpu.memory_space<vmem>>, %arg5: memref<32x1xf32, #tpu.memory_space<vmem>>, %arg6: memref<32x64xf32, #tpu.memory_space<vmem>>) attributes {dimension_semantics = [#tpu.dimension_semantics<parallel>], iteration_bounds = array<i64: 2>, scalar_prefetch = 0 : i64, scratch_operands = 0 : i64, tpu.core_type = #tpu.core_type<tc>, window_params = [{transform_indices = @transform_0, window_bounds = array<i64: 32, 1>}, {transform_indices = @transform_1, window_bounds = array<i64: 32, 63>}, {transform_indices = @transform_2, window_bounds = array<i64: 32, 63>}, {transform_indices = @transform_3, window_bounds = array<i64: 32, 1>}, {transform_indices = @transform_4, window_bounds = array<i64: 32, 1>}, {transform_indices = @transform_5, window_bounds = array<i64: 32, 64>}]} {
    %c0 = arith.constant 0 : index
    %c0_0 = arith.constant 0 : index
    %0 = vector.load %arg1[%c0, %c0_0] : memref<32x1xf32, #tpu.memory_space<vmem>>, vector<32x1xf32>
    %c0_1 = arith.constant 0 : index
    %c0_2 = arith.constant 0 : index
    %1 = vector.load %arg2[%c0_1, %c0_2] : memref<32x63xf32, #tpu.memory_space<vmem>>, vector<32x63xf32>
    %2 = vector.broadcast %0 : vector<32x1xf32> to vector<32x63xf32>
    %3 = arith.mulf %2, %1 : vector<32x63xf32>
    %c0_3 = arith.constant 0 : index
    %c0_4 = arith.constant 0 : index
    %4 = vector.load %arg3[%c0_3, %c0_4] : memref<32x63xf32, #tpu.memory_space<vmem>>, vector<32x63xf32>
    %5 = arith.addf %3, %4 : vector<32x63xf32>
    %6 = math.sin %5 : vector<32x63xf32>
    %c0_5 = arith.constant 0 : index
    %c0_6 = arith.constant 0 : index
    %7 = vector.load %arg6[%c0_5, %c0_6] : memref<32x64xf32, #tpu.memory_space<vmem>>, vector<32x63xf32>
    tpu.vector_store %arg6[%c0_5, %c0_6], %6 {strides = array<i32>} : memref<32x64xf32, #tpu.memory_space<vmem>>, vector<32x63xf32>,
    %c0_7 = arith.constant 0 : index
    %c0_8 = arith.constant 0 : index
    %8 = vector.load %arg4[%c0_7, %c0_8] : memref<32x1xf32, #tpu.memory_space<vmem>>, vector<32x1xf32>
    %9 = arith.mulf %0, %8 : vector<32x1xf32>
    %c0_9 = arith.constant 0 : index
    %c0_10 = arith.constant 0 : index
    %10 = vector.load %arg5[%c0_9, %c0_10] : memref<32x1xf32, #tpu.memory_space<vmem>>, vector<32x1xf32>
    %11 = arith.addf %9, %10 : vector<32x1xf32>
    %c0_11 = arith.constant 0 : index
    %c63 = arith.constant 63 : index
    %12 = vector.load %arg6[%c0_11, %c63] : memref<32x64xf32, #tpu.memory_space<vmem>>, vector<32x1xf32>
    tpu.vector_store %arg6[%c0_11, %c63], %11 {strides = array<i32>} : memref<32x64xf32, #tpu.memory_space<vmem>>, vector<32x1xf32>,
    return
  }
  func.func @transform_0(%arg0: i32) -> (i32, i32) {
    %c0_i32 = arith.constant 0 : i32
    %c0_i32_0 = arith.constant 0 : i32
    return %arg0, %c0_i32 : i32, i32
  }
  func.func @transform_1(%arg0: i32) -> (i32, i32) {
    %c0_i32 = arith.constant 0 : i32
    %c0_i32_0 = arith.constant 0 : i32
    return %arg0, %c0_i32 : i32, i32
  }
  func.func @transform_2(%arg0: i32) -> (i32, i32) {
    %c0_i32 = arith.constant 0 : i32
    %c0_i32_0 = arith.constant 0 : i32
    return %arg0, %c0_i32 : i32, i32
  }
  func.func @transform_3(%arg0: i32) -> (i32, i32) {
    %c0_i32 = arith.constant 0 : i32
    %c0_i32_0 = arith.constant 0 : i32
    return %arg0, %c0_i32 : i32, i32
  }
  func.func @transform_4(%arg0: i32) -> (i32, i32) {
    %c0_i32 = arith.constant 0 : i32
    %c0_i32_0 = arith.constant 0 : i32
    return %arg0, %c0_i32 : i32, i32
  }
  func.func @transform_5(%arg0: i32) -> (i32, i32) {
    %c0_i32 = arith.constant 0 : i32
    %c0_i32_0 = arith.constant 0 : i32
    return %arg0, %c0_i32 : i32, i32
  }
}

</mosaic_0001>

<llo_original>
// kernel: tpu_custom_call.1
$region0: #{tpu_custom_call.1}
  #allocation0 [shape = 'u32[]', space=smem, size = 0x4, offset = 0x4, fixed_abs, tag = 'smem constant byte address 0x4 - core index']
  #allocation1 [shape = 'u32[144,128]{1,0:T(1,128)}', space=vmem, size = 0x12000, scoped, tag = 'internal scratch']
  %s0 = inlined_call_operand.vmem [shape: f32[64,1], index: 0, kind: input, shape index: {}]
  %s1 = inlined_call_operand.vmem [shape: f32[64,63], index: 1, kind: input, shape index: {}]
  %s2 = inlined_call_operand.vmem [shape: f32[64,63], index: 2, kind: input, shape index: {}]
  %s3 = inlined_call_operand.vmem [shape: f32[64,1], index: 3, kind: input, shape index: {}]
  %s4 = inlined_call_operand.vmem [shape: f32[64,1], index: 4, kind: input, shape index: {}]
  %s5 = inlined_call_operand.hbm [shape: f32[64,64], index: 5, kind: output, shape index: {}]
  %s6 = sld [smem:[#allocation0]]
  $region53: #{tpu_custom_call.1} parent=0
    _
  %s8 = ssub.s32 1, %s6
  %s9 = scalar_select 0, %s8, %s6
  $region1: #{tpu_custom_call.1} parent=0
    #allocation2 [shape = 'u8[32768]{0}', space=vmem, size = 0x8000, scoped, tag = 'output window, operand 0']
    #allocation3 [shape = 's32[2]{0}', space=sflag, size = 0x8, scoped, tag = 'scoped memory for tpu_custom_call.1']
    %10 = vsyncpa [#allocation3], 0
    %s11 = scalar_lea.sflag [#allocation3], 1
    %12 = vsyncpa %s11, 0
    loop: start=0, step=1, limit=4
    $region2: #{tpu_custom_call.1} parent=1 // loop_pre_header
      _
    $region3: #{tpu_custom_call.1} parent=1 // loop_header
      %s14 = sphi 0, %s18
      %p15 = scmp.ge.s32.totalorder %s14, 4
      %s24 = sphi 0, %s26
      %s27 = sphi 0, %s24
      %s28 = sphi 0, %s27
      %s44 = sphi 0, %s28
      %s50 = sphi 0, %s52
      %s53 = sphi 0, %s50
      %s54 = sphi 0, %s53
      %s70 = sphi 0, %s54
      %s76 = sphi 0, %s78
      %s79 = sphi 0, %s76
      %s80 = sphi 0, %s79
      %s96 = sphi 0, %s80
      %s102 = sphi 0, %s104
      %s105 = sphi 0, %s102
      %s106 = sphi 0, %s105
      %s122 = sphi 0, %s106
      %s128 = sphi 0, %s130
      %s131 = sphi 0, %s128
      %s132 = sphi 0, %s131
      %s148 = sphi 0, %s132
      %s154 = sphi 0, %s156
      %s157 = sphi 0, %s154
      %s158 = sphi 0, %s157
      %s174 = sphi 0, %s158
    $region4: #{tpu_custom_call.1} parent=1 // loop_header_branch
      %17 = sbr.rel (%p15) target = $region8
    $region5: #{tpu_custom_call.1} parent=1 // loop_body
      %s19 = ssub.s32 %s14, 1
      %s20 = ssub.s32 %s14, 2
      %s21 = sadd.s32 %s14, 1
      %s22 = ssub.s32 %s14, %s21
      %p23 = scmp.eq.s32.totalorder %s22, 0
      %s25 = sadd.s32 %s24, 1
      %s26 = scalar_select %p23, %s24, %s25
      %p29 = pneg %p23
      %p30 = scmp.eq.s32.totalorder %s14, 1
      %p31 = por %p29, %p30
      %p32 = scmp.ne.s32.totalorder %s24, %s27
      %p33 = scmp.eq.s32.totalorder %s14, 0
      %p34 = por %p32, %p33
      %p35 = scmp.ne.s32.totalorder %s24, %s27
      %p36 = scmp.eq.s32.totalorder %s19, 1
      %p37 = por %p35, %p36
      %p38 = scmp.ne.s32.totalorder %s27, %s28
      %p39 = scmp.eq.s32.totalorder %s19, 0
      %p40 = por %p38, %p39
      %p41 = scmp.ne.s32.totalorder %s27, %s28
      %p42 = scmp.eq.s32.totalorder %s20, 1
      %p43 = por %p41, %p42
      %p45 = scmp.ne.s32.totalorder %s28, %s44
      %p46 = scmp.eq.s32.totalorder %s20, 0
      %p47 = por %p45, %p46
      %s48 = ssub.s32 %s14, %s21
      %p49 = scmp.eq.s32.totalorder %s48, 0
      %s51 = sadd.s32 %s50, 1
      %s52 = scalar_select %p49, %s50, %s51
      %p55 = pneg %p49
      %p56 = scmp.eq.s32.totalorder %s14, 1
      %p57 = por %p55, %p56
      %p58 = scmp.ne.s32.totalorder %s50, %s53
      %p59 = scmp.eq.s32.totalorder %s14, 0
      %p60 = por %p58, %p59
      %p61 = scmp.ne.s32.totalorder %s50, %s53
      %p62 = scmp.eq.s32.totalorder %s19, 1
      %p63 = por %p61, %p62
      %p64 = scmp.ne.s32.totalorder %s53, %s54
      %p65 = scmp.eq.s32.totalorder %s19, 0
      %p66 = por %p64, %p65
      %p67 = scmp.ne.s32.totalorder %s53, %s54
      %p68 = scmp.eq.s32.totalorder %s20, 1
      %p69 = por %p67, %p68
      %p71 = scmp.ne.s32.totalorder %s54, %s70
      %p72 = scmp.eq.s32.totalorder %s20, 0
      %p73 = por %p71, %p72
      %s74 = ssub.s32 %s14, %s21
      %p75 = scmp.eq.s32.totalorder %s74, 0
      %s77 = sadd.s32 %s76, 1
      %s78 = scalar_select %p75, %s76, %s77
      %p81 = pneg %p75
      %p82 = scmp.eq.s32.totalorder %s14, 1
      %p83 = por %p81, %p82
      %p84 = scmp.ne.s32.totalorder %s76, %s79
      %p85 = scmp.eq.s32.totalorder %s14, 0
      %p86 = por %p84, %p85
      %p87 = scmp.ne.s32.totalorder %s76, %s79
      %p88 = scmp.eq.s32.totalorder %s19, 1
      %p89 = por %p87, %p88
      %p90 = scmp.ne.s32.totalorder %s79, %s80
      %p91 = scmp.eq.s32.totalorder %s19, 0
      %p92 = por %p90, %p91
      %p93 = scmp.ne.s32.totalorder %s79, %s80
      %p94 = scmp.eq.s32.totalorder %s20, 1
      %p95 = por %p93, %p94
      %p97 = scmp.ne.s32.totalorder %s80, %s96
      %p98 = scmp.eq.s32.totalorder %s20, 0
      %p99 = por %p97, %p98
      %s100 = ssub.s32 %s14, %s21
      %p101 = scmp.eq.s32.totalorder %s100, 0
      %s103 = sadd.s32 %s102, 1
      %s104 = scalar_select %p101, %s102, %s103
      %p107 = pneg %p101
      %p108 = scmp.eq.s32.totalorder %s14, 1
      %p109 = por %p107, %p108
      %p110 = scmp.ne.s32.totalorder %s102, %s105
      %p111 = scmp.eq.s32.totalorder %s14, 0
      %p112 = por %p110, %p111
      %p113 = scmp.ne.s32.totalorder %s102, %s105
      %p114 = scmp.eq.s32.totalorder %s19, 1
      %p115 = por %p113, %p114
      %p116 = scmp.ne.s32.totalorder %s105, %s106
      %p117 = scmp.eq.s32.totalorder %s19, 0
      %p118 = por %p116, %p117
      %p119 = scmp.ne.s32.totalorder %s105, %s106
      %p120 = scmp.eq.s32.totalorder %s20, 1
      %p121 = por %p119, %p120
      %p123 = scmp.ne.s32.totalorder %s106, %s122
      %p124 = scmp.eq.s32.totalorder %s20, 0
      %p125 = por %p123, %p124
      %s126 = ssub.s32 %s14, %s21
      %p127 = scmp.eq.s32.totalorder %s126, 0
      %s129 = sadd.s32 %s128, 1
      %s130 = scalar_select %p127, %s128, %s129
      %p133 = pneg %p127
      %p134 = scmp.eq.s32.totalorder %s14, 1
      %p135 = por %p133, %p134
      %p136 = scmp.ne.s32.totalorder %s128, %s131
      %p137 = scmp.eq.s32.totalorder %s14, 0
      %p138 = por %p136, %p137
      %p139 = scmp.ne.s32.totalorder %s128, %s131
      %p140 = scmp.eq.s32.totalorder %s19, 1
      %p141 = por %p139, %p140
      %p142 = scmp.ne.s32.totalorder %s131, %s132
      %p143 = scmp.eq.s32.totalorder %s19, 0
      %p144 = por %p142, %p143
      %p145 = scmp.ne.s32.totalorder %s131, %s132
      %p146 = scmp.eq.s32.totalorder %s20, 1
      %p147 = por %p145, %p146
      %p149 = scmp.ne.s32.totalorder %s132, %s148
      %p150 = scmp.eq.s32.totalorder %s20, 0
      %p151 = por %p149, %p150
      %s152 = ssub.s32 %s14, %s21
      %p153 = scmp.eq.s32.totalorder %s152, 0
      %s155 = sadd.s32 %s154, 1
      %s156 = scalar_select %p153, %s154, %s155
      %p159 = pneg %p153
      %p160 = scmp.eq.s32.totalorder %s14, 1
      %p161 = por %p159, %p160
      %p162 = scmp.ne.s32.totalorder %s154, %s157
      %p163 = scmp.eq.s32.totalorder %s14, 0
      %p164 = por %p162, %p163
      %p165 = scmp.ne.s32.totalorder %s154, %s157
      %p166 = scmp.eq.s32.totalorder %s19, 1
      %p167 = por %p165, %p166
      %p168 = scmp.ne.s32.totalorder %s157, %s158
      %p169 = scmp.eq.s32.totalorder %s19, 0
      %p170 = por %p168, %p169
      %p171 = scmp.ne.s32.totalorder %s157, %s158
      %p172 = scmp.eq.s32.totalorder %s20, 1
      %p173 = por %p171, %p172
      %p175 = scmp.ne.s32.totalorder %s158, %s174
      %p176 = scmp.eq.s32.totalorder %s20, 0
      %p177 = por %p175, %p176
      %p178 = scmp.le.s32.totalorder 1, %s14
      %p179 = scmp.lt.s32.totalorder %s14, 3
      %p180 = pnand %p178, %p179
      %p181 = pneg %p180
      // Predicated region
      $region9: #{tpu_custom_call.1} parent=5 // pred_check
        _
      $region10: #{tpu_custom_call.1} parent=5 // pred_check_branch
        %183 = sbr.rel (%p180) target = $region12
      $region11: #{tpu_custom_call.1} parent=5 // pred_region
        %s184 = ssub.s32 %s14, 1
      $region12: #{tpu_custom_call.1} parent=5 // pred_fallthru
        _
      %p185 = scmp.lt.s32.totalorder %s14, 2
      // Predicated region
      $region13: #{tpu_custom_call.1} parent=5 // pred_check
        %p186 = pneg %p185
      $region14: #{tpu_custom_call.1} parent=5 // pred_check_branch
        %188 = sbr.rel (%p186) target = $region16
      $region15: #{tpu_custom_call.1} parent=5 // pred_region
        // Predicated region
        $region17: #{tpu_custom_call.1} parent=15 // pred_check
          %p189 = pneg %p34
        $region18: #{tpu_custom_call.1} parent=15 // pred_check_branch
          %191 = sbr.rel (%p189) target = $region20
        $region19: #{tpu_custom_call.1} parent=15 // pred_region
          %s192 = smul.u32 4, %s14
          %p193 = scmp.lt.s32.totalorder %s192, 7
          %s194 = scalar_select %p193, %s192, 7
          %s195 = smul.addr %s194, 8
          %s196 = scalar_lea.vmem %s0, %s195
          %s197 = smul.u32 4, %s14
        $region20: #{tpu_custom_call.1} parent=15 // pred_fallthru
          _
        // Predicated region
        $region21: #{tpu_custom_call.1} parent=15 // pred_check
          %p198 = pneg %p60
        $region22: #{tpu_custom_call.1} parent=15 // pred_check_branch
          %200 = sbr.rel (%p198) target = $region24
        $region23: #{tpu_custom_call.1} parent=15 // pred_region
          %s201 = smul.u32 4, %s14
          %p202 = scmp.lt.s32.totalorder %s201, 7
          %s203 = scalar_select %p202, %s201, 7
          %s204 = smul.addr %s203, 8
          %s205 = scalar_lea.vmem %s1, %s204
          %s206 = smul.u32 4, %s14
        $region24: #{tpu_custom_call.1} parent=15 // pred_fallthru
          _
        // Predicated region
        $region25: #{tpu_custom_call.1} parent=15 // pred_check
          %p207 = pneg %p86
        $region26: #{tpu_custom_call.1} parent=15 // pred_check_branch
          %209 = sbr.rel (%p207) target = $region28
        $region27: #{tpu_custom_call.1} parent=15 // pred_region
          %s210 = smul.u32 4, %s14
          %p211 = scmp.lt.s32.totalorder %s210, 7
          %s212 = scalar_select %p211, %s210, 7
          %s213 = smul.addr %s212, 8
          %s214 = scalar_lea.vmem %s2, %s213
          %s215 = smul.u32 4, %s14
        $region28: #{tpu_custom_call.1} parent=15 // pred_fallthru
          _
        // Predicated region
        $region29: #{tpu_custom_call.1} parent=15 // pred_check
          %p216 = pneg %p112
        $region30: #{tpu_custom_call.1} parent=15 // pred_check_branch
          %218 = sbr.rel (%p216) target = $region32
        $region31: #{tpu_custom_call.1} parent=15 // pred_region
          %s219 = smul.u32 4, %s14
          %p220 = scmp.lt.s32.totalorder %s219, 7
          %s221 = scalar_select %p220, %s219, 7
          %s222 = smul.addr %s221, 8
          %s223 = scalar_lea.vmem %s3, %s222
          %s224 = smul.u32 4, %s14
        $region32: #{tpu_custom_call.1} parent=15 // pred_fallthru
          _
        // Predicated region
        $region33: #{tpu_custom_call.1} parent=15 // pred_check
          %p225 = pneg %p138
        $region34: #{tpu_custom_call.1} parent=15 // pred_check_branch
          %227 = sbr.rel (%p225) target = $region36
        $region35: #{tpu_custom_call.1} parent=15 // pred_region
          %s228 = smul.u32 4, %s14
          %p229 = scmp.lt.s32.totalorder %s228, 7
          %s230 = scalar_select %p229, %s228, 7
          %s231 = smul.addr %s230, 8
          %s232 = scalar_lea.vmem %s4, %s231
          %s233 = smul.u32 4, %s14
        $region36: #{tpu_custom_call.1} parent=15 // pred_fallthru
          _
      $region16: #{tpu_custom_call.1} parent=5 // pred_fallthru
        _
      %p234 = scmp.le.s32.totalorder 1, %s14
      %p235 = scmp.lt.s32.totalorder %s14, 3
      %p236 = pnand %p234, %p235
      %p237 = pneg %p236
      // Predicated region
      $region37: #{tpu_custom_call.1} parent=5 // pred_check
        _
      $region38: #{tpu_custom_call.1} parent=5 // pred_check_branch
        %239 = sbr.rel (%p236) target = $region40
      $region39: #{tpu_custom_call.1} parent=5 // pred_region
        %s240 = ssub.s32 %s14, 1
        %s241 = smul.u32 4, %s19
        %p242 = scmp.lt.s32.totalorder %s241, 7
        %s243 = scalar_select %p242, %s241, 7
        %s244 = smul.addr %s243, 8
        %s245 = scalar_lea.vmem %s0, %s244
        %p246 = pneg %p40
        %p247 = pneg %p37
        %s248 = smul.u32 4, %s19
        %p249 = scmp.lt.s32.totalorder %s248, 7
        %s250 = scalar_select %p249, %s248, 7
        %s251 = smul.addr %s250, 8
        %s252 = scalar_lea.vmem %s1, %s251
        %p253 = pneg %p66
        %p254 = pneg %p63
        %s255 = smul.u32 4, %s19
        %p256 = scmp.lt.s32.totalorder %s255, 7
        %s257 = scalar_select %p256, %s255, 7
        %s258 = smul.addr %s257, 8
        %s259 = scalar_lea.vmem %s2, %s258
        %p260 = pneg %p92
        %p261 = pneg %p89
        %s262 = smul.u32 4, %s19
        %p263 = scmp.lt.s32.totalorder %s262, 7
        %s264 = scalar_select %p263, %s262, 7
        %s265 = smul.addr %s264, 8
        %s266 = scalar_lea.vmem %s3, %s265
        %p267 = pneg %p118
        %p268 = pneg %p115
        %s269 = smul.u32 4, %s19
        %p270 = scmp.lt.s32.totalorder %s269, 7
        %s271 = scalar_select %p270, %s269, 7
        %s272 = smul.addr %s271, 8
        %s273 = scalar_lea.vmem %s4, %s272
        %p274 = pneg %p144
        %p275 = pneg %p141
        %p276 = pneg %p170
        %p277 = pneg %p167
        %s278 = sand.u32 %s157, 1
        %s279 = scalar_lea.sflag [#allocation3], %s278
        %s280 = sand.u32 %s157, 1
        %s281 = smul.addr %s280, 32
        %s282 = scalar_lea.vmem [#allocation2], %s281
        %s283 = smul.u32 4, %s19
        %p284 = scmp.lt.s32.totalorder %s283, 7
        %s285 = scalar_select %p284, %s283, 7
        %s286 = smul.addr %s285, 8
        %s287 = scalar_lea.vmem %s0, %s286
        %s288 = smul.u32 4, %s19
        %s289 = smul.u32 4, %s19
        %p290 = scmp.lt.s32.totalorder %s289, 7
        %s291 = scalar_select %p290, %s289, 7
        %s292 = smul.addr %s291, 8
        %s293 = scalar_lea.vmem %s1, %s292
        %s294 = smul.u32 4, %s19
        %s295 = smul.u32 4, %s19
        %p296 = scmp.lt.s32.totalorder %s295, 7
        %s297 = scalar_select %p296, %s295, 7
        %s298 = smul.addr %s297, 8
        %s299 = scalar_lea.vmem %s2, %s298
        %s300 = smul.u32 4, %s19
        %s301 = smul.u32 4, %s19
        %p302 = scmp.lt.s32.totalorder %s301, 7
        %s303 = scalar_select %p302, %s301, 7
        %s304 = smul.addr %s303, 8
        %s305 = scalar_lea.vmem %s3, %s304
        %s306 = smul.u32 4, %s19
        %s307 = smul.u32 4, %s19
        %p308 = scmp.lt.s32.totalorder %s307, 7
        %s309 = scalar_select %p308, %s307, 7
        %s310 = smul.addr %s309, 8
        %s311 = scalar_lea.vmem %s4, %s310
        %s312 = smul.u32 4, %s19
        %s313 = smul.u32 4, %s19
        %v314 = vld [vmem:[%s287] sm:$0xff]
        %v315 = vld [vmem:[%s287 + $0x8] sm:$0xff]
        %v316 = vld [vmem:[%s287 + $0x10] sm:$0xff]
        %v317 = vld [vmem:[%s287 + $0x18] sm:$0xff]
        %v318 = vld [vmem:[%s293] sm:$0xff]
        %v319 = vld [vmem:[%s293 + $0x8] sm:$0xff]
        %v320 = vld [vmem:[%s293 + $0x10] sm:$0xff]
        %v321 = vld [vmem:[%s293 + $0x18] sm:$0xff]
        %323 = vset.pattern.permute.xlu0 0
        %324 = vperm.xlu0 %323, %v314
        %v325 = vpop.permute.xlu0 %324
        %328 = vset.pattern.permute.xlu0 0
        %329 = vperm.xlu0 %328, %v315
        %v330 = vpop.permute.xlu0 %329
        %333 = vset.pattern.permute.xlu0 0
        %334 = vperm.xlu0 %333, %v316
        %v335 = vpop.permute.xlu0 %334
        %338 = vset.pattern.permute.xlu0 0
        %339 = vperm.xlu0 %338, %v317
        %v340 = vpop.permute.xlu0 %339
        %v342 = vmul.f32 %v325, %v318
        %v343 = vmul.f32 %v330, %v319
        %v344 = vmul.f32 %v335, %v320
        %v345 = vmul.f32 %v340, %v321
        %v346 = vld [vmem:[%s299] sm:$0xff]
        %v347 = vld [vmem:[%s299 + $0x8] sm:$0xff]
        %v348 = vld [vmem:[%s299 + $0x10] sm:$0xff]
        %v349 = vld [vmem:[%s299 + $0x18] sm:$0xff]
        %v350 = vadd.f32 %v342, %v346
        %v351 = vadd.f32 %v343, %v347
        %v352 = vadd.f32 %v344, %v348
        %v353 = vadd.f32 %v345, %v349
        %v354 = vand.u32 2147483647, %v350
        %vm355 = vcmp.le.f32.partialorder %v354, 0.7853982
        %vm356 = vcmp.lt.s32.totalorder %v350, 0
        %v357 = vand.u32 %v350, 2139095040
        %v358 = vshrl.u32 %v357, 23
        %v359 = vsub.s32 %v358, 127
        %v360 = vand.u32 2147483647, %v350
        %v361 = vand.u32 %v360, 8388607
        %v362 = vor.u32 %v361, 8388608
        %v363 = vsub.s32 0, %v362
        %v364 = vadd.s32 %v359, 1
        %vm365 = vcmp.gt.s32.totalorder %v364, 0
        %v366 = vsel %vm365, %v364, 0
        %v367 = vshrl.u32 %v366, 5
        %v368 = vand.u32 %v366, 31
        %v369 = vsub.s32 32, %v368
        %v370 = vshrl.u32 683565275, %v369
        %v371 = vshll.u32 683565275, %v368
        %v372 = vshrl.u32 2475754826, %v369
        %v373 = vor.u32 %v371, %v372
        %v374 = vshll.u32 2475754826, %v368
        %v375 = vshrl.u32 2131351028, %v369
        %v376 = vor.u32 %v374, %v375
        %v377 = vshll.u32 2131351028, %v368
        %v378 = vshrl.u32 2102212464, %v369
        %v379 = vor.u32 %v377, %v378
        %v380 = vshll.u32 2102212464, %v368
        %v381 = vshrl.u32 920167782, %v369
        %v382 = vor.u32 %v380, %v381
        %v383 = vshll.u32 920167782, %v368
        %v384 = vshrl.u32 1326507024, %v369
        %v385 = vor.u32 %v383, %v384
        %vm386 = vcmp.lt.s32.totalorder %v367, 1
        %vm387 = vcmp.lt.s32.totalorder %v367, 2
        %vm388 = vcmp.lt.s32.totalorder %v367, 3
        %vm389 = vcmp.lt.s32.totalorder %v367, 4
        %v390 = vsel %vm386, %v370, %v373
        %v391 = vsel %vm389, %v379, 2102212464
        %v392 = vsel %vm388, %v376, %v391
        %v393 = vsel %vm387, %v390, %v392
        %v394 = vsel %vm386, %v373, %v376
        %v395 = vsel %vm389, %v382, 920167782
        %v396 = vsel %vm388, %v379, %v395
        %v397 = vsel %vm387, %v394, %v396
        %v398 = vsel %vm386, %v376, %v379
        %v399 = vsel %vm389, %v385, 1326507024
        %v400 = vsel %vm388, %v382, %v399
        %v401 = vsel %vm387, %v398, %v400
        %v402 = vshll.u32 %v362, 8
        %v403 = vmul.u32.u64.compose %v402, %v401
        %v404 = vextract.low.u32 %v403
        %v405 = vextract.high.u32 %v403
        %v406 = vmul.u32.u64.compose %v402, %v397
        %v407 = vextract.low.u32 %v406
        %v408 = vextract.high.u32 %v406
        %v409 = vmul.u32 %v402, %v393
        %v410 = vadd.s32 %v405, %v407
        %vm411 = vc.u32 %v405, %v407
        %v412 = vadd.s32 %v408, 1
        %v413 = vsel %vm411, %v412, %v408
        %v414 = vadd.s32 %v409, %v413
        %v415 = vadd.s32 %v414, 536870912
        %v416 = vshrl.u32 %v415, 30
        %v417 = vshll.u32 %v416, 30
        %v418 = vsub.s32 %v414, %v417
        %vm419 = vcmp.lt.s32.totalorder %v418, 0
        %v420 = vsub.s32 0, %v418
        %v421 = vsel %vm419, %v420, %v418
        %v422 = vclz %v421
        %v423 = vsub.s32 %v422, 2
        %vm424 = vcmp.gt.s32.totalorder 0, %v423
        %v425 = vsel %vm424, 0, %v423
        %v426 = vsub.s32 32, %v425
        %v427 = vshll.u32 %v418, %v425
        %v428 = vshrl.u32 %v410, %v426
        %v429 = vor.u32 %v427, %v428
        %v430 = vsub.s32 4294967266, %v425
        %v431 = vadd.s32 %v430, 127
        %v432 = vshll.u32 %v431, 23
        %v433 = vor.u32 4788187, %v432
        %v434 = vand.u32 2147483647, %v433
        %v436 = vcvt.s32.f32 %v429
        %v437 = vmul.f32 %v436, %v434
        %v438 = vxor.u32 %v437, 2147483648
        %v439 = vsel %vm356, %v438, %v437
        %v440 = vsub.s32 4, %v416
        %v441 = vsel %vm356, %v440, %v416
        %v442 = vsel %vm355, %v350, %v439
        %v443 = vsel %vm355, 0, %v441
        %v444 = vcosq.f32.pop %v442
        %v445 = vsinq.f32.pop %v442
        %vm446 = vweird.f32 %v350
        %v447 = vadd.s32 %v443, 3
        %v448 = vand.u32 %v447, 3
        %vm449 = vcmp.lt.s32.totalorder %v448, 2
        %vm450 = vcmp.eq.s32.totalorder %v448, 0
        %v451 = vxor.u32 %v445, 2147483648
        %v452 = vsel %vm450, %v444, %v451
        %vm453 = vcmp.eq.s32.totalorder %v448, 2
        %v454 = vxor.u32 %v444, 2147483648
        %v455 = vsel %vm453, %v454, %v445
        %v456 = vsel %vm449, %v452, %v455
        %v457 = vsel %vm446, nan, %v456
        %v458 = vand.u32 2147483647, %v351
        %vm459 = vcmp.le.f32.partialorder %v458, 0.7853982
        %vm460 = vcmp.lt.s32.totalorder %v351, 0
        %v461 = vand.u32 %v351, 2139095040
        %v462 = vshrl.u32 %v461, 23
        %v463 = vsub.s32 %v462, 127
        %v464 = vand.u32 2147483647, %v351
        %v465 = vand.u32 %v464, 8388607
        %v466 = vor.u32 %v465, 8388608
        %v467 = vsub.s32 0, %v466
        %v468 = vadd.s32 %v463, 1
        %vm469 = vcmp.gt.s32.totalorder %v468, 0
        %v470 = vsel %vm469, %v468, 0
        %v471 = vshrl.u32 %v470, 5
        %v472 = vand.u32 %v470, 31
        %v473 = vsub.s32 32, %v472
        %v474 = vshrl.u32 683565275, %v473
        %v475 = vshll.u32 683565275, %v472
        %v476 = vshrl.u32 2475754826, %v473
        %v477 = vor.u32 %v475, %v476
        %v478 = vshll.u32 2475754826, %v472
        %v479 = vshrl.u32 2131351028, %v473
        %v480 = vor.u32 %v478, %v479
        %v481 = vshll.u32 2131351028, %v472
        %v482 = vshrl.u32 2102212464, %v473
        %v483 = vor.u32 %v481, %v482
        %v484 = vshll.u32 2102212464, %v472
        %v485 = vshrl.u32 920167782, %v473
        %v486 = vor.u32 %v484, %v485
        %v487 = vshll.u32 920167782, %v472
        %v488 = vshrl.u32 1326507024, %v473
        %v489 = vor.u32 %v487, %v488
        %vm490 = vcmp.lt.s32.totalorder %v471, 1
        %vm491 = vcmp.lt.s32.totalorder %v471, 2
        %vm492 = vcmp.lt.s32.totalorder %v471, 3
        %vm493 = vcmp.lt.s32.totalorder %v471, 4
        %v494 = vsel %vm490, %v474, %v477
        %v495 = vsel %vm493, %v483, 2102212464
        %v496 = vsel %vm492, %v480, %v495
        %v497 = vsel %vm491, %v494, %v496
        %v498 = vsel %vm490, %v477, %v480
        %v499 = vsel %vm493, %v486, 920167782
        %v500 = vsel %vm492, %v483, %v499
        %v501 = vsel %vm491, %v498, %v500
        %v502 = vsel %vm490, %v480, %v483
        %v503 = vsel %vm493, %v489, 1326507024
        %v504 = vsel %vm492, %v486, %v503
        %v505 = vsel %vm491, %v502, %v504
        %v506 = vshll.u32 %v466, 8
        %v507 = vmul.u32.u64.compose %v506, %v505
        %v508 = vextract.low.u32 %v507
        %v509 = vextract.high.u32 %v507
        %v510 = vmul.u32.u64.compose %v506, %v501
        %v511 = vextract.low.u32 %v510
        %v512 = vextract.high.u32 %v510
        %v513 = vmul.u32 %v506, %v497
        %v514 = vadd.s32 %v509, %v511
        %vm515 = vc.u32 %v509, %v511
        %v516 = vadd.s32 %v512, 1
        %v517 = vsel %vm515, %v516, %v512
        %v518 = vadd.s32 %v513, %v517
        %v519 = vadd.s32 %v518, 536870912
        %v520 = vshrl.u32 %v519, 30
        %v521 = vshll.u32 %v520, 30
        %v522 = vsub.s32 %v518, %v521
        %vm523 = vcmp.lt.s32.totalorder %v522, 0
        %v524 = vsub.s32 0, %v522
        %v525 = vsel %vm523, %v524, %v522
        %v526 = vclz %v525
        %v527 = vsub.s32 %v526, 2
        %vm528 = vcmp.gt.s32.totalorder 0, %v527
        %v529 = vsel %vm528, 0, %v527
        %v530 = vsub.s32 32, %v529
        %v531 = vshll.u32 %v522, %v529
        %v532 = vshrl.u32 %v514, %v530
        %v533 = vor.u32 %v531, %v532
        %v534 = vsub.s32 4294967266, %v529
        %v535 = vadd.s32 %v534, 127
        %v536 = vshll.u32 %v535, 23
        %v537 = vor.u32 4788187, %v536
        %v538 = vand.u32 2147483647, %v537
        %v540 = vcvt.s32.f32 %v533
        %v541 = vmul.f32 %v540, %v538
        %v542 = vxor.u32 %v541, 2147483648
        %v543 = vsel %vm460, %v542, %v541
        %v544 = vsub.s32 4, %v520
        %v545 = vsel %vm460, %v544, %v520
        %v546 = vsel %vm459, %v351, %v543
        %v547 = vsel %vm459, 0, %v545
        %v548 = vcosq.f32.pop %v546
        %v549 = vsinq.f32.pop %v546
        %vm550 = vweird.f32 %v351
        %v551 = vadd.s32 %v547, 3
        %v552 = vand.u32 %v551, 3
        %vm553 = vcmp.lt.s32.totalorder %v552, 2
        %vm554 = vcmp.eq.s32.totalorder %v552, 0
        %v555 = vxor.u32 %v549, 2147483648
        %v556 = vsel %vm554, %v548, %v555
        %vm557 = vcmp.eq.s32.totalorder %v552, 2
        %v558 = vxor.u32 %v548, 2147483648
        %v559 = vsel %vm557, %v558, %v549
        %v560 = vsel %vm553, %v556, %v559
        %v561 = vsel %vm550, nan, %v560
        %v562 = vand.u32 2147483647, %v352
        %vm563 = vcmp.le.f32.partialorder %v562, 0.7853982
        %vm564 = vcmp.lt.s32.totalorder %v352, 0
        %v565 = vand.u32 %v352, 2139095040
        %v566 = vshrl.u32 %v565, 23
        %v567 = vsub.s32 %v566, 127
        %v568 = vand.u32 2147483647, %v352
        %v569 = vand.u32 %v568, 8388607
        %v570 = vor.u32 %v569, 8388608
        %v571 = vsub.s32 0, %v570
        %v572 = vadd.s32 %v567, 1
        %vm573 = vcmp.gt.s32.totalorder %v572, 0
        %v574 = vsel %vm573, %v572, 0
        %v575 = vshrl.u32 %v574, 5
        %v576 = vand.u32 %v574, 31
        %v577 = vsub.s32 32, %v576
        %v578 = vshrl.u32 683565275, %v577
        %v579 = vshll.u32 683565275, %v576
        %v580 = vshrl.u32 2475754826, %v577
        %v581 = vor.u32 %v579, %v580
        %v582 = vshll.u32 2475754826, %v576
        %v583 = vshrl.u32 2131351028, %v577
        %v584 = vor.u32 %v582, %v583
        %v585 = vshll.u32 2131351028, %v576
        %v586 = vshrl.u32 2102212464, %v577
        %v587 = vor.u32 %v585, %v586
        %v588 = vshll.u32 2102212464, %v576
        %v589 = vshrl.u32 920167782, %v577
        %v590 = vor.u32 %v588, %v589
        %v591 = vshll.u32 920167782, %v576
        %v592 = vshrl.u32 1326507024, %v577
        %v593 = vor.u32 %v591, %v592
        %vm594 = vcmp.lt.s32.totalorder %v575, 1
        %vm595 = vcmp.lt.s32.totalorder %v575, 2
        %vm596 = vcmp.lt.s32.totalorder %v575, 3
        %vm597 = vcmp.lt.s32.totalorder %v575, 4
        %v598 = vsel %vm594, %v578, %v581
        %v599 = vsel %vm597, %v587, 2102212464
        %v600 = vsel %vm596, %v584, %v599
        %v601 = vsel %vm595, %v598, %v600
        %v602 = vsel %vm594, %v581, %v584
        %v603 = vsel %vm597, %v590, 920167782
        %v604 = vsel %vm596, %v587, %v603
        %v605 = vsel %vm595, %v602, %v604
        %v606 = vsel %vm594, %v584, %v587
        %v607 = vsel %vm597, %v593, 1326507024
        %v608 = vsel %vm596, %v590, %v607
        %v609 = vsel %vm595, %v606, %v608
        %v610 = vshll.u32 %v570, 8
        %v611 = vmul.u32.u64.compose %v610, %v609
        %v612 = vextract.low.u32 %v611
        %v613 = vextract.high.u32 %v611
        %v614 = vmul.u32.u64.compose %v610, %v605
        %v615 = vextract.low.u32 %v614
        %v616 = vextract.high.u32 %v614
        %v617 = vmul.u32 %v610, %v601
        %v618 = vadd.s32 %v613, %v615
        %vm619 = vc.u32 %v613, %v615
        %v620 = vadd.s32 %v616, 1
        %v621 = vsel %vm619, %v620, %v616
        %v622 = vadd.s32 %v617, %v621
        %v623 = vadd.s32 %v622, 536870912
        %v624 = vshrl.u32 %v623, 30
        %v625 = vshll.u32 %v624, 30
        %v626 = vsub.s32 %v622, %v625
        %vm627 = vcmp.lt.s32.totalorder %v626, 0
        %v628 = vsub.s32 0, %v626
        %v629 = vsel %vm627, %v628, %v626
        %v630 = vclz %v629
        %v631 = vsub.s32 %v630, 2
        %vm632 = vcmp.gt.s32.totalorder 0, %v631
        %v633 = vsel %vm632, 0, %v631
        %v634 = vsub.s32 32, %v633
        %v635 = vshll.u32 %v626, %v633
        %v636 = vshrl.u32 %v618, %v634
        %v637 = vor.u32 %v635, %v636
        %v638 = vsub.s32 4294967266, %v633
        %v639 = vadd.s32 %v638, 127
        %v640 = vshll.u32 %v639, 23
        %v641 = vor.u32 4788187, %v640
        %v642 = vand.u32 2147483647, %v641
        %v644 = vcvt.s32.f32 %v637
        %v645 = vmul.f32 %v644, %v642
        %v646 = vxor.u32 %v645, 2147483648
        %v647 = vsel %vm564, %v646, %v645
        %v648 = vsub.s32 4, %v624
        %v649 = vsel %vm564, %v648, %v624
        %v650 = vsel %vm563, %v352, %v647
        %v651 = vsel %vm563, 0, %v649
        %v652 = vcosq.f32.pop %v650
        %v653 = vsinq.f32.pop %v650
        %vm654 = vweird.f32 %v352
        %v655 = vadd.s32 %v651, 3
        %v656 = vand.u32 %v655, 3
        %vm657 = vcmp.lt.s32.totalorder %v656, 2
        %vm658 = vcmp.eq.s32.totalorder %v656, 0
        %v659 = vxor.u32 %v653, 2147483648
        %v660 = vsel %vm658, %v652, %v659
        %vm661 = vcmp.eq.s32.totalorder %v656, 2
        %v662 = vxor.u32 %v652, 2147483648
        %v663 = vsel %vm661, %v662, %v653
        %v664 = vsel %vm657, %v660, %v663
        %v665 = vsel %vm654, nan, %v664
        %v666 = vand.u32 2147483647, %v353
        %vm667 = vcmp.le.f32.partialorder %v666, 0.7853982
        %vm668 = vcmp.lt.s32.totalorder %v353, 0
        %v669 = vand.u32 %v353, 2139095040
        %v670 = vshrl.u32 %v669, 23
        %v671 = vsub.s32 %v670, 127
        %v672 = vand.u32 2147483647, %v353
        %v673 = vand.u32 %v672, 8388607
        %v674 = vor.u32 %v673, 8388608
        %v675 = vsub.s32 0, %v674
        %v676 = vadd.s32 %v671, 1
        %vm677 = vcmp.gt.s32.totalorder %v676, 0
        %v678 = vsel %vm677, %v676, 0
        %v679 = vshrl.u32 %v678, 5
        %v680 = vand.u32 %v678, 31
        %v681 = vsub.s32 32, %v680
        %v682 = vshrl.u32 683565275, %v681
        %v683 = vshll.u32 683565275, %v680
        %v684 = vshrl.u32 2475754826, %v681
        %v685 = vor.u32 %v683, %v684
        %v686 = vshll.u32 2475754826, %v680
        %v687 = vshrl.u32 2131351028, %v681
        %v688 = vor.u32 %v686, %v687
        %v689 = vshll.u32 2131351028, %v680
        %v690 = vshrl.u32 2102212464, %v681
        %v691 = vor.u32 %v689, %v690
        %v692 = vshll.u32 2102212464, %v680
        %v693 = vshrl.u32 920167782, %v681
        %v694 = vor.u32 %v692, %v693
        %v695 = vshll.u32 920167782, %v680
        %v696 = vshrl.u32 1326507024, %v681
        %v697 = vor.u32 %v695, %v696
        %vm698 = vcmp.lt.s32.totalorder %v679, 1
        %vm699 = vcmp.lt.s32.totalorder %v679, 2
        %vm700 = vcmp.lt.s32.totalorder %v679, 3
        %vm701 = vcmp.lt.s32.totalorder %v679, 4
        %v702 = vsel %vm698, %v682, %v685
        %v703 = vsel %vm701, %v691, 2102212464
        %v704 = vsel %vm700, %v688, %v703
        %v705 = vsel %vm699, %v702, %v704
        %v706 = vsel %vm698, %v685, %v688
        %v707 = vsel %vm701, %v694, 920167782
        %v708 = vsel %vm700, %v691, %v707
        %v709 = vsel %vm699, %v706, %v708
        %v710 = vsel %vm698, %v688, %v691
        %v711 = vsel %vm701, %v697, 1326507024
        %v712 = vsel %vm700, %v694, %v711
        %v713 = vsel %vm699, %v710, %v712
        %v714 = vshll.u32 %v674, 8
        %v715 = vmul.u32.u64.compose %v714, %v713
        %v716 = vextract.low.u32 %v715
        %v717 = vextract.high.u32 %v715
        %v718 = vmul.u32.u64.compose %v714, %v709
        %v719 = vextract.low.u32 %v718
        %v720 = vextract.high.u32 %v718
        %v721 = vmul.u32 %v714, %v705
        %v722 = vadd.s32 %v717, %v719
        %vm723 = vc.u32 %v717, %v719
        %v724 = vadd.s32 %v720, 1
        %v725 = vsel %vm723, %v724, %v720
        %v726 = vadd.s32 %v721, %v725
        %v727 = vadd.s32 %v726, 536870912
        %v728 = vshrl.u32 %v727, 30
        %v729 = vshll.u32 %v728, 30
        %v730 = vsub.s32 %v726, %v729
        %vm731 = vcmp.lt.s32.totalorder %v730, 0
        %v732 = vsub.s32 0, %v730
        %v733 = vsel %vm731, %v732, %v730
        %v734 = vclz %v733
        %v735 = vsub.s32 %v734, 2
        %vm736 = vcmp.gt.s32.totalorder 0, %v735
        %v737 = vsel %vm736, 0, %v735
        %v738 = vsub.s32 32, %v737
        %v739 = vshll.u32 %v730, %v737
        %v740 = vshrl.u32 %v722, %v738
        %v741 = vor.u32 %v739, %v740
        %v742 = vsub.s32 4294967266, %v737
        %v743 = vadd.s32 %v742, 127
        %v744 = vshll.u32 %v743, 23
        %v745 = vor.u32 4788187, %v744
        %v746 = vand.u32 2147483647, %v745
        %v748 = vcvt.s32.f32 %v741
        %v749 = vmul.f32 %v748, %v746
        %v750 = vxor.u32 %v749, 2147483648
        %v751 = vsel %vm668, %v750, %v749
        %v752 = vsub.s32 4, %v728
        %v753 = vsel %vm668, %v752, %v728
        %v754 = vsel %vm667, %v353, %v751
        %v755 = vsel %vm667, 0, %v753
        %v756 = vcosq.f32.pop %v754
        %v757 = vsinq.f32.pop %v754
        %vm758 = vweird.f32 %v353
        %v759 = vadd.s32 %v755, 3
        %v760 = vand.u32 %v759, 3
        %vm761 = vcmp.lt.s32.totalorder %v760, 2
        %vm762 = vcmp.eq.s32.totalorder %v760, 0
        %v763 = vxor.u32 %v757, 2147483648
        %v764 = vsel %vm762, %v756, %v763
        %vm765 = vcmp.eq.s32.totalorder %v760, 2
        %v766 = vxor.u32 %v756, 2147483648
        %v767 = vsel %vm765, %v766, %v757
        %v768 = vsel %vm761, %v764, %v767
        %v769 = vsel %vm758, nan, %v768
        %vm770 = vcmask 515072
        %771 = vst.msk [vmem:[%s282] sm:$0xff] %vm770, %v457
        %772 = vst.msk [vmem:[%s282 + $0x8] sm:$0xff] %vm770, %v561
        %773 = vst.msk [vmem:[%s282 + $0x10] sm:$0xff] %vm770, %v665
        %774 = vst.msk [vmem:[%s282 + $0x18] sm:$0xff] %vm770, %v769
        %v775 = vld [vmem:[%s305] sm:$0xff]
        %v776 = vld [vmem:[%s305 + $0x8] sm:$0xff]
        %v777 = vld [vmem:[%s305 + $0x10] sm:$0xff]
        %v778 = vld [vmem:[%s305 + $0x18] sm:$0xff]
        %v779 = vmul.f32 %v314, %v775
        %v780 = vmul.f32 %v315, %v776
        %v781 = vmul.f32 %v316, %v777
        %v782 = vmul.f32 %v317, %v778
        %v783 = vld [vmem:[%s311] sm:$0xff]
        %v784 = vld [vmem:[%s311 + $0x8] sm:$0xff]
        %v785 = vld [vmem:[%s311 + $0x10] sm:$0xff]
        %v786 = vld [vmem:[%s311 + $0x18] sm:$0xff]
        %v787 = vadd.f32 %v779, %v783
        %v788 = vadd.f32 %v780, %v784
        %v789 = vadd.f32 %v781, %v785
        %v790 = vadd.f32 %v782, %v786
        %795 = vrot.lane.b32.xlu0 %v787, 63
        %v796 = vpop.permute.xlu0 %795
        %797 = vrot.lane.b32.xlu0 %v788, 63
        %v798 = vpop.permute.xlu0 %797
        %799 = vrot.lane.b32.xlu0 %v789, 63
        %v800 = vpop.permute.xlu0 %799
        %801 = vrot.lane.b32.xlu0 %v790, 63
        %v802 = vpop.permute.xlu0 %801
        %vm807 = vcmask 523768
        %808 = vst.msk [vmem:[%s282] sm:$0xff] %vm807, %v796
        %809 = vst.msk [vmem:[%s282 + $0x8] sm:$0xff] %vm807, %v798
        %810 = vst.msk [vmem:[%s282 + $0x10] sm:$0xff] %vm807, %v800
        %811 = vst.msk [vmem:[%s282 + $0x18] sm:$0xff] %vm807, %v802
        %s812 = sand.u32 %s157, 1
        %s813 = scalar_lea.sflag [#allocation3], %s812
        %s814 = sand.u32 %s157, 1
        %s815 = smul.addr %s814, 32
        %s816 = scalar_lea.vmem [#allocation2], %s815
        // Predicated region
        $region41: #{tpu_custom_call.1} parent=39 // pred_check
          %p817 = pneg %p167
        $region42: #{tpu_custom_call.1} parent=39 // pred_check_branch
          %819 = sbr.rel (%p817) target = $region44
        $region43: #{tpu_custom_call.1} parent=39 // pred_region
          %s820 = smul.u32 4, %s19
          %s822 = ssub.s32 512, 512
          %823 = vsyncadd %s813, %s822
          %s824 = smul.addr %s820, 128
          %s825 = scalar_lea.hbm %s5, %s824
          %s826 = sshll.u32 %s816, 4
          %s827 = int_to_ptr.vmem [resolvable:$true] %s826
          %832 = dma.vmem_to_hbm [thread:$0]  %s827, 512, %s825, %s813, 128, 128, 8
        $region44: #{tpu_custom_call.1} parent=39 // pred_fallthru
          _
      $region40: #{tpu_custom_call.1} parent=5 // pred_fallthru
        _
      %p833 = scmp.le.s32.totalorder 2, %s14
      // Predicated region
      $region45: #{tpu_custom_call.1} parent=5 // pred_check
        %p834 = pneg %p833
      $region46: #{tpu_custom_call.1} parent=5 // pred_check_branch
        %836 = sbr.rel (%p834) target = $region48
      $region47: #{tpu_custom_call.1} parent=5 // pred_region
        %s837 = ssub.s32 %s14, 2
        // Predicated region
        $region49: #{tpu_custom_call.1} parent=47 // pred_check
          %p838 = pneg %p173
        $region50: #{tpu_custom_call.1} parent=47 // pred_check_branch
          %840 = sbr.rel (%p838) target = $region52
        $region51: #{tpu_custom_call.1} parent=47 // pred_region
          %s841 = sand.u32 %s158, 1
          %s842 = scalar_lea.sflag [#allocation3], %s841
          %s843 = sand.u32 %s158, 1
          %s844 = smul.addr %s843, 32
          %s845 = scalar_lea.vmem [#allocation2], %s844
          %846 = dma.done %s842, 512
        $region52: #{tpu_custom_call.1} parent=47 // pred_fallthru
          _
      $region48: #{tpu_custom_call.1} parent=5 // pred_fallthru
        _
    $region6: #{tpu_custom_call.1} parent=1 // loop_footer
      %s18 = sadd.s32 1, %s14
    $region7: #{tpu_custom_call.1} parent=1 // loop_footer_branch
      %13 = sbr.rel target = $region3
    $region8: #{tpu_custom_call.1} parent=1 // loop_exit
      _
    %847 = vsyncpa [#allocation3], 1
    %s848 = scalar_lea.sflag [#allocation3], 1
    %849 = vsyncpa %s848, 1

</llo_original>
